<compile_context>
chip_gen: v7x
topology: tpu7x:2x2x1
jax: 0.10.0
libtpu: 0.0.40
codegen_flags: <defaults>
</compile_context>

<pallas_src>
import functools

import numpy as np

import jax
import jax.numpy as jnp
from jax.experimental import pallas as pl
from jax.experimental.pallas import tpu as pltpu

KERNEL_SIZE = 4
STRIDE = 2
PADDING = 1


def _round_up(x: int, m: int) -> int:
    return ((x + m - 1) // m) * m


def _lane_pad(n: int) -> int:
    return _round_up(max(int(n), 1), 128)


def _vmem_capacity_bytes() -> int:
    try:
        info = pltpu.get_tpu_info()
        cap = getattr(info, "vmem_capacity_bytes", None)
        if cap:
            return int(cap)
    except Exception:
        pass
    return 64 << 20  # safe default: v7x per-TensorCore VMEM


def _down_kernel(x_ref, halo_ref, w_ref, bias_ref, o_ref, *, c_in, compute_dtype):
    """One (batch, L-tile, Cout-tile) grid step.

    x_ref    : (1, TM, 2*C_in)  natural pairs: row q = [x[2q] | x[2q+1]] (tile-local)
    halo_ref : (1, 8, C_in)     row 0 = x[2*i*TM - 1] (or 0), row 1 = x[2*(i+1)*TM] (or 0)
    w_ref    : (4*C_in, TN)     stacked taps [W0; W1; W2; W3], W_k[c, o] = weight[o, c, k]
    bias_ref : (1, TN)          f32 bias
    o_ref    : (1, TM, TN)
    """
    c = c_in
    v = x_ref[0].astype(compute_dtype)                      # (TM, 2C)  [x[2r] | x[2r+1]]
    a = v[:, :c]                                            # (TM, C)   x[2r]
    b = v[:, c:]                                            # (TM, C)   x[2r+1]
    halo = halo_ref[0].astype(compute_dtype)                # (8, C)

    # bf16 LHS shifts (cheap), instead of shifting the f32 (TM, TN) result.
    b_prev = jnp.concatenate([halo[0:1, :], b[:-1, :]], axis=0)   # x[2r-1]
    a_next = jnp.concatenate([a[1:, :], halo[1:2, :]], axis=0)    # x[2r+2]

    # lhs[:, k*C + c] = x[2r - 1 + k, c]  ->  single fused MXU pass, depth 4*C_in.
    lhs = jnp.concatenate([b_prev, v, a_next], axis=1)            # (TM, 4C)
    acc = jnp.dot(lhs, w_ref[...], preferred_element_type=jnp.float32)

    # f32 epilogue (bias add) -> cast only at the store (keeps v5e's VPU on f32).
    o_ref[0] = (acc + bias_ref[...]).astype(o_ref.dtype)


@functools.partial(jax.jit, static_argnames=("compute_dtype",))
def downsample_forward(x, weight, bias, *, compute_dtype=jnp.bfloat16):
    """x: (B, L, C_in). weight: (C_out, C_in, 4) (PyTorch Conv1d layout).
    bias: (C_out,). Returns (B, L_out, C_out), L_out = (L + 2 - 4)//2 + 1."""
    B, L, C_in = x.shape
    C_out, C_in_w, K = weight.shape
    assert C_in_w == C_in and K == KERNEL_SIZE
    L_out = (L + 2 * PADDING - KERNEL_SIZE) // STRIDE + 1
    assert L_out >= 1
    C2, C4 = 2 * C_in, 4 * C_in
    x_bytes = x.dtype.itemsize
    w_bytes = jnp.dtype(compute_dtype).itemsize

    # ---- output-channel tiling: natural width when small (no 8x write blowup) --
    if C_out <= 1024:
        TN, C_out_p = C_out, C_out
    else:
        TN = 512
        C_out_p = _round_up(C_out, TN)
    n_nt = C_out_p // TN

    # ---- generation-aware VMEM budget (includes f32/bf16 temporaries) ----------
    vmem_cap = _vmem_capacity_bytes()
    vmem_limit = int(min(vmem_cap * 9 // 10, 112 * (1 << 20)))
    budget = (vmem_limit * 6) // 10

    def _vmem_bytes(tm):
        in_blk = tm * _lane_pad(C2) * x_bytes
        out_blk = tm * _lane_pad(TN) * x_bytes
        w_blk = _round_up(C4, 8) * _lane_pad(TN) * w_bytes
        halo_blk = 8 * _lane_pad(C_in) * x_bytes
        bias_blk = 8 * _lane_pad(TN) * 4
        dbl = 2 * (in_blk + out_blk + w_blk + halo_blk + bias_blk)  # double-buffered I/O
        temps = (tm * _lane_pad(C4) * w_bytes * 2       # fused bf16 LHS (+ shifted pieces)
                 + tm * _lane_pad(C2) * w_bytes         # bf16 cast of the input tile
                 + tm * _lane_pad(TN) * 4 * 2)          # f32 accumulator + epilogue temp
        return dbl + temps

    TM = 1024
    while TM > 8 and _vmem_bytes(TM) > budget:
        TM //= 2
    TM = max(8, min(TM, _round_up(L_out, 8)))
    n_lt = pl.cdiv(L_out, TM)
    # v7x has 2 TensorCores: make sure a 1-step grid becomes >= 2 parallel steps.
    if B == 1 and n_lt == 1 and n_nt == 1 and TM >= 16:
        TM = _round_up(pl.cdiv(L_out, 2), 8)
        n_lt = pl.cdiv(L_out, TM)
    Lp = n_lt * TM

    # ---- main input: pairs of x, in place (no HBM copy when 2*Lp == L) ---------
    L_need = 2 * Lp
    if L_need > L:
        x_ev = jnp.pad(x, ((0, 0), (0, L_need - L), (0, 0)))
    elif L_need < L:                      # odd-L tail; x[L-1] arrives via the halo
        x_ev = x[:, :L_need, :]
    else:
        x_ev = x
    v_main = x_ev.reshape(B, Lp, C2)      # free, row-major-compatible reshape

    # ---- tiny per-L-tile halo rows: left = x[2*i*TM - 1], right = x[2*(i+1)*TM] --
    tiles = np.arange(n_lt)
    l_idx = 2 * tiles * TM - 1
    r_idx = 2 * (tiles + 1) * TM
    l_valid = (l_idx >= 0) & (l_idx < L)
    r_valid = (r_idx >= 0) & (r_idx < L)
    l_gather = np.clip(l_idx, 0, L - 1)
    r_gather = np.clip(r_idx, 0, L - 1)
    halo = jnp.stack(
        [x[:, l_gather, :] * jnp.asarray(l_valid, x.dtype)[None, :, None],
         x[:, r_gather, :] * jnp.asarray(r_valid, x.dtype)[None, :, None]],
        axis=2)                                             # (B, n_lt, 2, C_in)
    halo = jnp.pad(halo, ((0, 0), (0, 0), (0, 6), (0, 0)))  # sublane-align to 8
    halo = halo.reshape(B, n_lt * 8, C_in)

    # ---- weights / bias ---------------------------------------------------------
    # w_all[k*C_in + c, o] = weight[o, c, k]  (natural tap order, matches lhs)
    w_all = jnp.transpose(weight, (2, 1, 0)).reshape(C4, C_out)
    bias_f32 = bias.astype(jnp.float32)
    if C_out_p != C_out:
        w_all = jnp.pad(w_all, ((0, 0), (0, C_out_p - C_out)))
        bias_f32 = jnp.pad(bias_f32, (0, C_out_p - C_out))
    w_all = w_all.astype(compute_dtype)
    bias_p = bias_f32.reshape(1, C_out_p)

    kernel = functools.partial(_down_kernel, c_in=C_in, compute_dtype=compute_dtype)

    cost = pl.CostEstimate(
        flops=2 * B * Lp * C4 * C_out_p,
        transcendentals=0,
        bytes_accessed=int(B * Lp * C2 * x_bytes
                           + B * n_lt * 8 * C_in * x_bytes
                           + C4 * C_out_p * w_bytes
                           + C_out_p * 4
                           + B * Lp * C_out_p * x_bytes),
    )

    out_p = pl.pallas_call(
        kernel,
        out_shape=jax.ShapeDtypeStruct((B, Lp, C_out_p), x.dtype),
        grid=(B, n_lt, n_nt),
        in_specs=[
            pl.BlockSpec((1, TM, C2), lambda b, i, j: (b, i, 0)),
            pl.BlockSpec((1, 8, C_in), lambda b, i, j: (b, i, 0)),
            pl.BlockSpec((C4, TN), lambda b, i, j: (0, j)),
            pl.BlockSpec((1, TN), lambda b, i, j: (0, j)),
        ],
        out_specs=pl.BlockSpec((1, TM, TN), lambda b, i, j: (b, i, j)),
        compiler_params=pltpu.CompilerParams(
            dimension_semantics=("parallel", "parallel", "parallel"),
            vmem_limit_bytes=vmem_limit),
        cost_estimate=cost,
    )(v_main, halo, w_all, bias_p)

    if Lp != L_out or C_out_p != C_out:
        out_p = out_p[:, :L_out, :C_out]
    return out_p


def _ref_forward(x, weight, bias, compute_dtype=jnp.float32):
    """Pure-JAX reference (Conv1d k=4, s=2, p=1), inputs rounded to compute_dtype."""
    B, L, C_in = x.shape
    C_out, _, K = weight.shape
    L_out = (L + 2 * PADDING - K) // STRIDE + 1
    xq = x.astype(compute_dtype).astype(jnp.float32)
    wq = weight.astype(compute_dtype).astype(jnp.float32)
    x_p = jnp.pad(xq, ((0, 0), (PADDING, PADDING), (0, 0)))
    cols = [x_p[:, k:k + STRIDE * L_out:STRIDE, :] for k in range(K)]
    patches = jnp.stack(cols, axis=2)                     # (B, L_out, K, C_in)
    return jnp.einsum('bikc,ock->bio', patches, wq) + bias[None, None, :]


if __name__ == "__main__":
    key = jax.random.PRNGKey(0)

    # (B, L, C_in, C_out): primary small config + tiling / halo / padding edge cases
    configs = [
        (2, 64, 8, 16),      # primary, matches the module's (B, L, C) forward
        (1, 2048, 16, 48),   # multiple L tiles: halo across tile boundaries + v7x split
        (1, 64, 8, 1100),    # C_out tiling (n_nt > 1) + channel padding + wrapper slice
        (2, 17, 4, 8),       # odd length: x[L-1] delivered via the right halo
    ]

    for cfg_id, (B, L, C_in, C_out) in enumerate(configs):
        k_x, k_w, k_b = jax.random.split(jax.random.fold_in(key, cfg_id), 3)
        x = jax.random.normal(k_x, (B, L, C_in), dtype=jnp.float32)
        fan_in = C_in * KERNEL_SIZE
        bound = 1.0 / (fan_in ** 0.5)
        weight = jax.random.uniform(k_w, (C_out, C_in, KERNEL_SIZE),
                                    minval=-bound, maxval=bound, dtype=jnp.float32)
        bias = jax.random.uniform(k_b, (C_out,), minval=-bound, maxval=bound,
                                  dtype=jnp.float32)

        out = jax.block_until_ready(downsample_forward(x, weight, bias))
        ref = _ref_forward(x, weight, bias, compute_dtype=jnp.bfloat16)

        L_out = (L + 2 * PADDING - KERNEL_SIZE) // STRIDE + 1
        assert out.shape == (B, L_out, C_out), (cfg_id, out.shape)
        max_err = float(jnp.max(jnp.abs(out - ref)))
        assert jnp.allclose(out, ref, atol=1e-2, rtol=1e-2), (cfg_id, max_err)

    print("KERNEL_OK")
</pallas_src>

<mosaic_0001>
module attributes {stable_mosaic.version = 11 : i64} {
  func.func @_down_kernel(%arg0: i32, %arg1: i32, %arg2: i32, %arg3: memref<1x32x16xf32, #tpu.memory_space<vmem>>, %arg4: memref<1x8x8xf32, #tpu.memory_space<vmem>>, %arg5: memref<32x16xbf16, #tpu.memory_space<vmem>>, %arg6: memref<1x16xf32, #tpu.memory_space<vmem>>, %arg7: memref<1x32x16xf32, #tpu.memory_space<vmem>>) attributes {dimension_semantics = [#tpu.dimension_semantics<parallel>, #tpu.dimension_semantics<parallel>, #tpu.dimension_semantics<parallel>], iteration_bounds = array<i64: 2, 1, 1>, scalar_prefetch = 0 : i64, scratch_operands = 0 : i64, tpu.core_type = #tpu.core_type<tc>, window_params = [{transform_indices = @transform_0, window_bounds = array<i64: 1, 32, 16>}, {transform_indices = @transform_1, window_bounds = array<i64: 1, 8, 8>}, {transform_indices = @transform_2, window_bounds = array<i64: 32, 16>}, {transform_indices = @transform_3, window_bounds = array<i64: 1, 16>}, {transform_indices = @transform_4, window_bounds = array<i64: 1, 32, 16>}]} {
    %c0 = arith.constant 0 : index
    %c0_0 = arith.constant 0 : index
    %c0_1 = arith.constant 0 : index
    %0 = vector.load %arg3[%c0, %c0_0, %c0_1] : memref<1x32x16xf32, #tpu.memory_space<vmem>>, vector<1x32x16xf32>
    %1 = vector.shape_cast %0 : vector<1x32x16xf32> to vector<32x16xf32>
    %2 = arith.truncf %1 : vector<32x16xf32> to vector<32x16xbf16>
    %3 = vector.extract_strided_slice %2 {offsets = [0, 0], sizes = [32, 8], strides = [1, 1]} : vector<32x16xbf16> to vector<32x8xbf16>
    %4 = vector.extract_strided_slice %2 {offsets = [0, 8], sizes = [32, 8], strides = [1, 1]} : vector<32x16xbf16> to vector<32x8xbf16>
    %c0_2 = arith.constant 0 : index
    %c0_3 = arith.constant 0 : index
    %c0_4 = arith.constant 0 : index
    %5 = vector.load %arg4[%c0_2, %c0_3, %c0_4] : memref<1x8x8xf32, #tpu.memory_space<vmem>>, vector<1x8x8xf32>
    %6 = vector.shape_cast %5 : vector<1x8x8xf32> to vector<8x8xf32>
    %7 = arith.truncf %6 : vector<8x8xf32> to vector<8x8xbf16>
    %8 = vector.extract_strided_slice %7 {offsets = [0, 0], sizes = [1, 8], strides = [1, 1]} : vector<8x8xbf16> to vector<1x8xbf16>
    %9 = vector.extract_strided_slice %4 {offsets = [0, 0], sizes = [31, 8], strides = [1, 1]} : vector<32x8xbf16> to vector<31x8xbf16>
    %10 = tpu.concatenate %8, %9 in 0 : vector<1x8xbf16>, vector<31x8xbf16> -> vector<32x8xbf16>
    %11 = vector.extract_strided_slice %3 {offsets = [1, 0], sizes = [31, 8], strides = [1, 1]} : vector<32x8xbf16> to vector<31x8xbf16>
    %12 = vector.extract_strided_slice %7 {offsets = [1, 0], sizes = [1, 8], strides = [1, 1]} : vector<8x8xbf16> to vector<1x8xbf16>
    %13 = tpu.concatenate %11, %12 in 0 : vector<31x8xbf16>, vector<1x8xbf16> -> vector<32x8xbf16>
    %14 = tpu.concatenate %10, %2, %13 in 1 : vector<32x8xbf16>, vector<32x16xbf16>, vector<32x8xbf16> -> vector<32x32xbf16>
    %c0_5 = arith.constant 0 : index
    %c0_6 = arith.constant 0 : index
    %15 = vector.load %arg5[%c0_5, %c0_6] : memref<32x16xbf16, #tpu.memory_space<vmem>>, vector<32x16xbf16>
    %cst = arith.constant dense<0.000000e+00> : vector<32x16xf32>
    %16 = tpu.matmul %14, %15, %cst {dimension_numbers = #tpu.dot_dimension_numbers<[1], [0], [0], [1], [0, 0, 1, 1], [], []>} : vector<32x32xbf16>, vector<32x16xbf16>, vector<32x16xf32> -> vector<32x16xf32>
    %c0_7 = arith.constant 0 : index
    %c0_8 = arith.constant 0 : index
    %17 = vector.load %arg6[%c0_7, %c0_8] : memref<1x16xf32, #tpu.memory_space<vmem>>, vector<1x16xf32>
    %18 = vector.broadcast %17 : vector<1x16xf32> to vector<32x16xf32>
    %19 = arith.addf %16, %18 : vector<32x16xf32>
    %c0_9 = arith.constant 0 : index
    %c0_10 = arith.constant 0 : index
    %c0_11 = arith.constant 0 : index
    %20 = vector.load %arg7[%c0_9, %c0_10, %c0_11] : memref<1x32x16xf32, #tpu.memory_space<vmem>>, vector<1x32x16xf32>
    %21 = vector.shape_cast %20 : vector<1x32x16xf32> to vector<32x16xf32>
    %22 = vector.shape_cast %19 : vector<32x16xf32> to vector<1x32x16xf32>
    tpu.vector_store %arg7[%c0_9, %c0_10, %c0_11], %22 {strides = array<i32>} : memref<1x32x16xf32, #tpu.memory_space<vmem>>, vector<1x32x16xf32>,
    return
  }
  func.func @transform_0(%arg0: i32, %arg1: i32, %arg2: i32) -> (i32, i32, i32) {
    %c0_i32 = arith.constant 0 : i32
    %c0_i32_0 = arith.constant 0 : i32
    return %arg0, %arg1, %c0_i32 : i32, i32, i32
  }
  func.func @transform_1(%arg0: i32, %arg1: i32, %arg2: i32) -> (i32, i32, i32) {
    %c0_i32 = arith.constant 0 : i32
    %c0_i32_0 = arith.constant 0 : i32
    return %arg0, %arg1, %c0_i32 : i32, i32, i32
  }
  func.func @transform_2(%arg0: i32, %arg1: i32, %arg2: i32) -> (i32, i32) {
    %c0_i32 = arith.constant 0 : i32
    %c0_i32_0 = arith.constant 0 : i32
    return %c0_i32, %arg2 : i32, i32
  }
  func.func @transform_3(%arg0: i32, %arg1: i32, %arg2: i32) -> (i32, i32) {
    %c0_i32 = arith.constant 0 : i32
    %c0_i32_0 = arith.constant 0 : i32
    return %c0_i32, %arg2 : i32, i32
  }
  func.func @transform_4(%arg0: i32, %arg1: i32, %arg2: i32) -> (i32, i32, i32) {
    %c0_i32 = arith.constant 0 : i32
    return %arg0, %arg1, %arg2 : i32, i32, i32
  }
}

</mosaic_0001>

<llo_original>
// kernel: downsample_forward.1
$region0: #{downsample_forward.1}
  #allocation0 [shape = 'u32[]', space=smem, size = 0x4, offset = 0x4, fixed_abs, tag = 'smem constant byte address 0x4 - core index']
  #allocation1 [shape = 'u32[144,128]{1,0:T(1,128)}', space=vmem, size = 0x12000, scoped, tag = 'internal scratch']
  %s0 = inlined_call_operand.vmem [shape: f32[2,32,16], index: 0, kind: input, shape index: {}]
  %s1 = inlined_call_operand.vmem [shape: f32[2,8,8], index: 1, kind: input, shape index: {}]
  %s2 = inlined_call_operand.vmem [shape: bf16[32,16], index: 2, kind: input, shape index: {}]
  %s3 = inlined_call_operand.vmem [shape: f32[1,16], index: 3, kind: input, shape index: {}]
  %s4 = inlined_call_operand.vmem [shape: f32[2,32,16], index: 4, kind: output, shape index: {}]
  %s5 = sld [smem:[#allocation0]]
  $region49: #{downsample_forward.1} parent=0
    _
  %s7 = ssub.s32 1, %s5
  %s8 = scalar_select 0, %s7, %s5
  loop: start=0, step=1, limit=4
  $region2: #{downsample_forward.1} parent=0 // loop_pre_header
    _
  $region3: #{downsample_forward.1} parent=0 // loop_header
    %s10 = sphi 0, %s14
    %p11 = scmp.ge.s32.totalorder %s10, 4
    %s17 = sphi 0, %s36
    %s18 = sphi 0, %s32
    %s19 = sphi 0, %s28
    %s20 = sphi 0, %s17
    %s21 = sphi 0, %s18
    %s22 = sphi 0, %s19
    %s23 = sphi 0, %s20
    %s24 = sphi 0, %s21
    %s25 = sphi 0, %s22
    %s41 = sphi 0, %s43
    %s44 = sphi 0, %s41
    %s45 = sphi 0, %s44
    %s61 = sphi 0, %s45
    %s69 = sphi 0, %s71
    %s72 = sphi 0, %s69
    %s73 = sphi 0, %s72
    %s89 = sphi 0, %s73
    %s95 = sphi 0, %s97
    %s98 = sphi 0, %s95
    %s99 = sphi 0, %s98
    %s115 = sphi 0, %s99
    %s121 = sphi 0, %s123
    %s124 = sphi 0, %s121
    %s125 = sphi 0, %s124
    %s141 = sphi 0, %s125
    %s151 = sphi 0, %s153
    %s154 = sphi 0, %s151
    %s155 = sphi 0, %s154
    %s171 = sphi 0, %s155
  $region4: #{downsample_forward.1} parent=0 // loop_header_branch
    %13 = sbr.rel (%p11) target = $region8
  $region5: #{downsample_forward.1} parent=0 // loop_body
    %s15 = ssub.s32 %s10, 1
    %s16 = ssub.s32 %s10, 2
    %s26 = sadd.s32 1, %s19
    %p27 = scmp.ge.s32.totalorder %s26, 1
    %s28 = scalar_select %p27, 0, %s26
    %s29 = sadd.s32 1, %s18
    %s30 = scalar_select %p27, %s29, %s18
    %p31 = scmp.ge.s32.totalorder %s30, 1
    %s32 = scalar_select %p31, 0, %s30
    %s33 = sadd.s32 1, %s17
    %s34 = scalar_select %p31, %s33, %s17
    %p35 = scmp.ge.s32.totalorder %s34, 2
    %s36 = scalar_select %p35, 0, %s34
    %s37 = ssub.s32 %s17, %s36
    %s38 = ssub.s32 %s18, %s32
    %s39 = sor.u32 %s37, %s38
    %p40 = scmp.eq.s32.totalorder %s39, 0
    %s42 = sadd.s32 %s41, 1
    %s43 = scalar_select %p40, %s41, %s42
    %p46 = pneg %p40
    %p47 = scmp.eq.s32.totalorder %s10, 1
    %p48 = por %p46, %p47
    %p49 = scmp.ne.s32.totalorder %s41, %s44
    %p50 = scmp.eq.s32.totalorder %s10, 0
    %p51 = por %p49, %p50
    %p52 = scmp.ne.s32.totalorder %s41, %s44
    %p53 = scmp.eq.s32.totalorder %s15, 1
    %p54 = por %p52, %p53
    %p55 = scmp.ne.s32.totalorder %s44, %s45
    %p56 = scmp.eq.s32.totalorder %s15, 0
    %p57 = por %p55, %p56
    %p58 = scmp.ne.s32.totalorder %s44, %s45
    %p59 = scmp.eq.s32.totalorder %s16, 1
    %p60 = por %p58, %p59
    %p62 = scmp.ne.s32.totalorder %s45, %s61
    %p63 = scmp.eq.s32.totalorder %s16, 0
    %p64 = por %p62, %p63
    %s65 = ssub.s32 %s17, %s36
    %s66 = ssub.s32 %s18, %s32
    %s67 = sor.u32 %s65, %s66
    %p68 = scmp.eq.s32.totalorder %s67, 0
    %s70 = sadd.s32 %s69, 1
    %s71 = scalar_select %p68, %s69, %s70
    %p74 = pneg %p68
    %p75 = scmp.eq.s32.totalorder %s10, 1
    %p76 = por %p74, %p75
    %p77 = scmp.ne.s32.totalorder %s69, %s72
    %p78 = scmp.eq.s32.totalorder %s10, 0
    %p79 = por %p77, %p78
    %p80 = scmp.ne.s32.totalorder %s69, %s72
    %p81 = scmp.eq.s32.totalorder %s15, 1
    %p82 = por %p80, %p81
    %p83 = scmp.ne.s32.totalorder %s72, %s73
    %p84 = scmp.eq.s32.totalorder %s15, 0
    %p85 = por %p83, %p84
    %p86 = scmp.ne.s32.totalorder %s72, %s73
    %p87 = scmp.eq.s32.totalorder %s16, 1
    %p88 = por %p86, %p87
    %p90 = scmp.ne.s32.totalorder %s73, %s89
    %p91 = scmp.eq.s32.totalorder %s16, 0
    %p92 = por %p90, %p91
    %s93 = ssub.s32 %s19, %s28
    %p94 = scmp.eq.s32.totalorder %s93, 0
    %s96 = sadd.s32 %s95, 1
    %s97 = scalar_select %p94, %s95, %s96
    %p100 = pneg %p94
    %p101 = scmp.eq.s32.totalorder %s10, 1
    %p102 = por %p100, %p101
    %p103 = scmp.ne.s32.totalorder %s95, %s98
    %p104 = scmp.eq.s32.totalorder %s10, 0
    %p105 = por %p103, %p104
    %p106 = scmp.ne.s32.totalorder %s95, %s98
    %p107 = scmp.eq.s32.totalorder %s15, 1
    %p108 = por %p106, %p107
    %p109 = scmp.ne.s32.totalorder %s98, %s99
    %p110 = scmp.eq.s32.totalorder %s15, 0
    %p111 = por %p109, %p110
    %p112 = scmp.ne.s32.totalorder %s98, %s99
    %p113 = scmp.eq.s32.totalorder %s16, 1
    %p114 = por %p112, %p113
    %p116 = scmp.ne.s32.totalorder %s99, %s115
    %p117 = scmp.eq.s32.totalorder %s16, 0
    %p118 = por %p116, %p117
    %s119 = ssub.s32 %s19, %s28
    %p120 = scmp.eq.s32.totalorder %s119, 0
    %s122 = sadd.s32 %s121, 1
    %s123 = scalar_select %p120, %s121, %s122
    %p126 = pneg %p120
    %p127 = scmp.eq.s32.totalorder %s10, 1
    %p128 = por %p126, %p127
    %p129 = scmp.ne.s32.totalorder %s121, %s124
    %p130 = scmp.eq.s32.totalorder %s10, 0
    %p131 = por %p129, %p130
    %p132 = scmp.ne.s32.totalorder %s121, %s124
    %p133 = scmp.eq.s32.totalorder %s15, 1
    %p134 = por %p132, %p133
    %p135 = scmp.ne.s32.totalorder %s124, %s125
    %p136 = scmp.eq.s32.totalorder %s15, 0
    %p137 = por %p135, %p136
    %p138 = scmp.ne.s32.totalorder %s124, %s125
    %p139 = scmp.eq.s32.totalorder %s16, 1
    %p140 = por %p138, %p139
    %p142 = scmp.ne.s32.totalorder %s125, %s141
    %p143 = scmp.eq.s32.totalorder %s16, 0
    %p144 = por %p142, %p143
    %s145 = ssub.s32 %s17, %s36
    %s146 = ssub.s32 %s18, %s32
    %s147 = sor.u32 %s145, %s146
    %s148 = ssub.s32 %s19, %s28
    %s149 = sor.u32 %s147, %s148
    %p150 = scmp.eq.s32.totalorder %s149, 0
    %s152 = sadd.s32 %s151, 1
    %s153 = scalar_select %p150, %s151, %s152
    %p156 = pneg %p150
    %p157 = scmp.eq.s32.totalorder %s10, 1
    %p158 = por %p156, %p157
    %p159 = scmp.ne.s32.totalorder %s151, %s154
    %p160 = scmp.eq.s32.totalorder %s10, 0
    %p161 = por %p159, %p160
    %p162 = scmp.ne.s32.totalorder %s151, %s154
    %p163 = scmp.eq.s32.totalorder %s15, 1
    %p164 = por %p162, %p163
    %p165 = scmp.ne.s32.totalorder %s154, %s155
    %p166 = scmp.eq.s32.totalorder %s15, 0
    %p167 = por %p165, %p166
    %p168 = scmp.ne.s32.totalorder %s154, %s155
    %p169 = scmp.eq.s32.totalorder %s16, 1
    %p170 = por %p168, %p169
    %p172 = scmp.ne.s32.totalorder %s155, %s171
    %p173 = scmp.eq.s32.totalorder %s16, 0
    %p174 = por %p172, %p173
    %p175 = scmp.le.s32.totalorder 1, %s10
    %p176 = scmp.lt.s32.totalorder %s10, 3
    %p177 = pnand %p175, %p176
    %p178 = pneg %p177
    // Predicated region
    $region9: #{downsample_forward.1} parent=5 // pred_check
      _
    $region10: #{downsample_forward.1} parent=5 // pred_check_branch
      %180 = sbr.rel (%p177) target = $region12
    $region11: #{downsample_forward.1} parent=5 // pred_region
      %s181 = ssub.s32 %s10, 1
      // Predicated region
      $region13: #{downsample_forward.1} parent=11 // pred_check
        %p182 = pneg %p111
      $region14: #{downsample_forward.1} parent=11 // pred_check_branch
        %184 = sbr.rel (%p182) target = $region16
      $region15: #{downsample_forward.1} parent=11 // pred_region
        %p185 = scmp.lt.s32.totalorder %s22, 0
        %s186 = scalar_select %p185, %s22, 0
        %s187 = smul.addr %s186, 4
        %s188 = scalar_lea.vmem %s2, %s187
      $region16: #{downsample_forward.1} parent=11 // pred_fallthru
        _
      // Predicated region
      $region17: #{downsample_forward.1} parent=11 // pred_check
        %p189 = pneg %p137
      $region18: #{downsample_forward.1} parent=11 // pred_check_branch
        %191 = sbr.rel (%p189) target = $region20
      $region19: #{downsample_forward.1} parent=11 // pred_region
        %p192 = scmp.lt.s32.totalorder %s22, 0
        %s193 = scalar_select %p192, %s22, 0
        %s194 = scalar_lea.vmem %s3, %s193
      $region20: #{downsample_forward.1} parent=11 // pred_fallthru
        _
    $region12: #{downsample_forward.1} parent=5 // pred_fallthru
      _
    %p195 = scmp.lt.s32.totalorder %s10, 2
    // Predicated region
    $region21: #{downsample_forward.1} parent=5 // pred_check
      %p196 = pneg %p195
    $region22: #{downsample_forward.1} parent=5 // pred_check_branch
      %198 = sbr.rel (%p196) target = $region24
    $region23: #{downsample_forward.1} parent=5 // pred_region
      // Predicated region
      $region25: #{downsample_forward.1} parent=23 // pred_check
        %p199 = pneg %p51
      $region26: #{downsample_forward.1} parent=23 // pred_check_branch
        %201 = sbr.rel (%p199) target = $region28
      $region27: #{downsample_forward.1} parent=23 // pred_region
        %s202 = smul.u32 4, %s18
        %p203 = scmp.lt.s32.totalorder %s17, 1
        %s204 = scalar_select %p203, %s17, 1
        %p205 = scmp.lt.s32.totalorder %s202, 3
        %s206 = scalar_select %p205, %s202, 3
        %s207 = smul.addr %s204, 4
        %s208 = sadd.s32 %s206, %s207
        %s209 = smul.addr %s208, 8
        %s210 = scalar_lea.vmem %s0, %s209
        %s211 = smul.u32 4, %s18
      $region28: #{downsample_forward.1} parent=23 // pred_fallthru
        _
      // Predicated region
      $region29: #{downsample_forward.1} parent=23 // pred_check
        %p212 = pneg %p79
      $region30: #{downsample_forward.1} parent=23 // pred_check_branch
        %214 = sbr.rel (%p212) target = $region32
      $region31: #{downsample_forward.1} parent=23 // pred_region
        %p215 = scmp.lt.s32.totalorder %s17, 1
        %s216 = scalar_select %p215, %s17, 1
        %p217 = scmp.lt.s32.totalorder %s18, 0
        %s218 = scalar_select %p217, %s18, 0
        %s219 = sadd.s32 %s218, %s216
        %s220 = smul.addr %s219, 8
        %s221 = scalar_lea.vmem %s1, %s220
      $region32: #{downsample_forward.1} parent=23 // pred_fallthru
        _
    $region24: #{downsample_forward.1} parent=5 // pred_fallthru
      _
    %p222 = scmp.le.s32.totalorder 1, %s10
    %p223 = scmp.lt.s32.totalorder %s10, 3
    %p224 = pnand %p222, %p223
    %p225 = pneg %p224
    // Predicated region
    $region33: #{downsample_forward.1} parent=5 // pred_check
      _
    $region34: #{downsample_forward.1} parent=5 // pred_check_branch
      %227 = sbr.rel (%p224) target = $region36
    $region35: #{downsample_forward.1} parent=5 // pred_region
      %s228 = ssub.s32 %s10, 1
      %s229 = smul.u32 4, %s21
      %p230 = scmp.lt.s32.totalorder %s20, 1
      %s231 = scalar_select %p230, %s20, 1
      %p232 = scmp.lt.s32.totalorder %s229, 3
      %s233 = scalar_select %p232, %s229, 3
      %s234 = smul.addr %s231, 4
      %s235 = sadd.s32 %s233, %s234
      %s236 = smul.addr %s235, 8
      %s237 = scalar_lea.vmem %s0, %s236
      %p238 = pneg %p57
      %p239 = pneg %p54
      %p240 = scmp.lt.s32.totalorder %s20, 1
      %s241 = scalar_select %p240, %s20, 1
      %p242 = scmp.lt.s32.totalorder %s21, 0
      %s243 = scalar_select %p242, %s21, 0
      %s244 = sadd.s32 %s243, %s241
      %s245 = smul.addr %s244, 8
      %s246 = scalar_lea.vmem %s1, %s245
      %p247 = pneg %p85
      %p248 = pneg %p82
      %p249 = scmp.lt.s32.totalorder %s22, 0
      %s250 = scalar_select %p249, %s22, 0
      %s251 = smul.addr %s250, 4
      %s252 = scalar_lea.vmem %s2, %s251
      %p253 = pneg %p111
      %p254 = pneg %p108
      %p255 = scmp.lt.s32.totalorder %s22, 0
      %s256 = scalar_select %p255, %s22, 0
      %s257 = scalar_lea.vmem %s3, %s256
      %p258 = pneg %p137
      %p259 = pneg %p134
      %p260 = pneg %p167
      %p261 = pneg %p164
      %s262 = smul.u32 4, %s21
      %p263 = scmp.lt.s32.totalorder %s20, 1
      %s264 = scalar_select %p263, %s20, 1
      %p265 = scmp.lt.s32.totalorder %s262, 3
      %s266 = scalar_select %p265, %s262, 3
      %p267 = scmp.lt.s32.totalorder %s22, 0
      %s268 = scalar_select %p267, %s22, 0
      %s269 = sadd.s32 %s268, %s266
      %s270 = smul.addr %s264, 4
      %s271 = sadd.s32 %s269, %s270
      %s272 = smul.addr %s271, 8
      %s273 = scalar_lea.vmem %s4, %s272
      %s274 = smul.u32 4, %s21
      %p275 = scmp.lt.s32.totalorder %s20, 1
      %s276 = scalar_select %p275, %s20, 1
      %p277 = scmp.lt.s32.totalorder %s274, 3
      %s278 = scalar_select %p277, %s274, 3
      %s279 = smul.addr %s276, 4
      %s280 = sadd.s32 %s278, %s279
      %s281 = smul.addr %s280, 8
      %s282 = scalar_lea.vmem %s0, %s281
      %s283 = smul.u32 4, %s21
      %p284 = scmp.lt.s32.totalorder %s20, 1
      %s285 = scalar_select %p284, %s20, 1
      %p286 = scmp.lt.s32.totalorder %s21, 0
      %s287 = scalar_select %p286, %s21, 0
      %s288 = sadd.s32 %s287, %s285
      %s289 = smul.addr %s288, 8
      %s290 = scalar_lea.vmem %s1, %s289
      %p291 = scmp.lt.s32.totalorder %s22, 0
      %s292 = scalar_select %p291, %s22, 0
      %s293 = smul.addr %s292, 4
      %s294 = scalar_lea.vmem %s2, %s293
      %p295 = scmp.lt.s32.totalorder %s22, 0
      %s296 = scalar_select %p295, %s22, 0
      %s297 = scalar_lea.vmem %s3, %s296
      %s298 = smul.u32 4, %s21
      %p299 = scmp.lt.s32.totalorder %s20, 1
      %s300 = scalar_select %p299, %s20, 1
      %p301 = scmp.lt.s32.totalorder %s298, 3
      %s302 = scalar_select %p301, %s298, 3
      %p303 = scmp.lt.s32.totalorder %s22, 0
      %s304 = scalar_select %p303, %s22, 0
      %s305 = sadd.s32 %s304, %s302
      %s306 = smul.addr %s300, 4
      %s307 = sadd.s32 %s305, %s306
      %s308 = smul.addr %s307, 8
      %s309 = scalar_lea.vmem %s4, %s308
      %s310 = smul.u32 4, %s21
      %v312 = vld [vmem:[%s282] sm:$0xff]
      %v313 = vld [vmem:[%s282 + $0x8] sm:$0xff]
      %v314 = vld [vmem:[%s282 + $0x10] sm:$0xff]
      %v315 = vld [vmem:[%s282 + $0x18] sm:$0xff]
      %v316 = vpack.c.bf16 %v313, %v312
      %v317 = vpack.c.bf16 %v315, %v314
      %v318 = vld [vmem:[%s290] sm:$0xff]
      %v319 = vpack.c.bf16 %v318, %v318
      %vm320 = vsmask.f32 256
      %v322 = vshrl.u32 %v316, 16
      %v324 = vrot.slane %v322, 7
      %v325 = vshll.u32 %v316, 16
      %v327 = vor.u32 %v324, %v325
      %v329 = vshrl.u32 %v317, 16
      %v331 = vrot.slane %v329, 7
      %v332 = vshll.u32 %v317, 16
      %v334 = vor.u32 %v331, %v332
      %v335 = vsel %vm320, %v324, %v334
      %336 = vrot.lane.b32.xlu0 %v327, 120
      %v337 = vpop.permute.xlu0 %336
      %338 = vrot.lane.b32.xlu0 %v335, 120
      %v339 = vpop.permute.xlu0 %338
      %vm341 = vcmask 1040384
      %vm342 = vmand %vm341, %vm320
      %v343 = vsel %vm342, %v319, %v337
      %vm344 = vsmask.f32 7424
      %v345 = vrot.slane %v325, 1
      %v346 = vor.u32 %v322, %v345
      %v347 = vrot.slane %v332, 1
      %v348 = vsel %vm344, %v346, %v347
      %v349 = vor.u32 %v329, %v347
      %v352 = vrot.slane %v319, 1
      %vm354 = vcmask 1047552
      %vm355 = vmand %vm354, %vm344
      %v356 = vsel %vm355, %v349, %v352
      %359 = vrot.lane.b32.xlu0 %v316, 8
      %v360 = vpop.permute.xlu0 %359
      %361 = vrot.lane.b32.xlu0 %v317, 8
      %v362 = vpop.permute.xlu0 %361
      %364 = vrot.lane.b32.xlu0 %v348, 24
      %v365 = vpop.permute.xlu0 %364
      %366 = vrot.lane.b32.xlu0 %v356, 24
      %v367 = vpop.permute.xlu0 %366
      %vm368 = vcmask 64512
      %v371 = vsel %vm368, %v343, %v360
      %v374 = vsel %vm368, %v339, %v362
      %vm375 = vcmask 195584
      %v377 = vsel %vm375, %v371, %v365
      %v379 = vsel %vm375, %v374, %v367
      %v380 = vld [vmem:[%s294] sm:$0xf]
      %v381 = vld [vmem:[%s294 + $0x4] sm:$0xf]
      %v382 = vld [vmem:[%s294 + $0x8] sm:$0xf]
      %v383 = vld [vmem:[%s294 + $0xc] sm:$0xf]
      %v384 = vld [vmem:[%s297] sm:$0x1]
      %v386 = vlaneseq
      %v387 = vshrl.u32 %v386, 7
      %v388 = vsub.s32 0, %v387
      %v389 = vrot.slane %v384, %v388
      %v395 = vunpack.c.l.b16 %v380
      %v396 = vunpack.c.l.b16 %v381
      %v397 = vunpack.c.l.b16 %v382
      %v398 = vunpack.c.l.b16 %v383
      %v399 = vpack.c.b16 %v396, %v395
      %v400 = vpack.c.b16 %v398, %v397
      %vm403 = vcmask 261120
      %v404 = vsel %vm403, %v377, 0
      %v406 = vsel %vm403, %v379, 0
      %408 = vmatprep.subr.bf16.mxu0 0
      %409 = vmatpush1.bf16.msra.mxu0 %v399
      %410 = vmatprep.subr.bf16.mxu0 0
      %411 = vmatpush1.bf16.msra.mxu0 %v400
      %412 = vmatprep.subr.bf16.mxu0 0
      %413 = vmatpush1.bf16.msra.mxu0 0
      %414 = vmatprep.subr.bf16.mxu0 0
      %415 = vmatpush1.bf16.msra.mxu0 0
      %416 = vmatprep.subr.bf16.mxu0 0
      %417 = vmatpush1.bf16.msra.mxu0 0
      %418 = vmatprep.subr.bf16.mxu0 0
      %419 = vmatpush1.bf16.msra.mxu0 0
      %420 = vmatprep.subr.bf16.mxu0 0
      %421 = vmatpush1.bf16.msra.mxu0 0
      %422 = vmatprep.subr.bf16.mxu0 0
      %423 = vmatpush1.bf16.msra.mxu0 0
      %424 = vmatprep.subr.bf16.mxu0 0
      %425 = vmatpush1.bf16.msra.mxu0 0
      %426 = vmatprep.subr.bf16.mxu0 0
      %427 = vmatpush1.bf16.msra.mxu0 0
      %428 = vmatprep.subr.bf16.mxu0 0
      %429 = vmatpush1.bf16.msra.mxu0 0
      %430 = vmatprep.subr.bf16.mxu0 0
      %431 = vmatpush1.bf16.msra.mxu0 0
      %432 = vmatprep.subr.bf16.mxu0 0
      %433 = vmatpush1.bf16.msra.mxu0 0
      %434 = vmatprep.subr.bf16.mxu0 0
      %435 = vmatpush1.bf16.msra.mxu0 0
      %436 = vmatprep.subr.bf16.mxu0 0
      %437 = vmatpush1.bf16.msra.mxu0 0
      %438 = vmatprep.subr.bf16.mxu0 0
      %439 = vmatpush1.bf16.msra.mxu0 0
      %440 = vmatprep.mubr.bf16.mxu0 0
      %441 = vmatmul.mubr.bf16.gmra.mrb[0].mxu0 %v404
      %v442 = vpop.f32.mrb[0].mxu0
      %v443 = vadd.f32 %v389, %v442
      %v444 = vpop.f32.mrb[0].mxu0
      %v445 = vpop.f32.mrb[0].mxu0
      %v446 = vadd.f32 %v389, %v445
      %v447 = vpop.f32.mrb[0].mxu0
      %448 = vmatprep.mubr.bf16.mxu0 0
      %449 = vmatmul.mubr.bf16.gmra.mrb[0].mxu0 %v406
      %v450 = vpop.f32.mrb[0].mxu0
      %v451 = vadd.f32 %v389, %v450
      %v452 = vpop.f32.mrb[0].mxu0
      %v453 = vpop.f32.mrb[0].mxu0
      %v454 = vadd.f32 %v389, %v453
      %v455 = vpop.f32.mrb[0].mxu0
      %456 = vdwg.mxu0
      %vm457 = vcmask 130048
      %458 = vst.msk [vmem:[%s309] sm:$0xff] %vm457, %v443
      %459 = vst.msk [vmem:[%s309 + $0x8] sm:$0xff] %vm457, %v446
      %460 = vst.msk [vmem:[%s309 + $0x10] sm:$0xff] %vm457, %v451
      %461 = vst.msk [vmem:[%s309 + $0x18] sm:$0xff] %vm457, %v454
      %s462 = smul.u32 4, %s21
      %p463 = scmp.lt.s32.totalorder %s20, 1
      %s464 = scalar_select %p463, %s20, 1
      %p465 = scmp.lt.s32.totalorder %s462, 3
      %s466 = scalar_select %p465, %s462, 3
      %p467 = scmp.lt.s32.totalorder %s22, 0
      %s468 = scalar_select %p467, %s22, 0
      %s469 = sadd.s32 %s468, %s466
      %s470 = smul.addr %s464, 4
      %s471 = sadd.s32 %s469, %s470
      %s472 = smul.addr %s471, 8
      %s473 = scalar_lea.vmem %s4, %s472
      // Predicated region
      $region37: #{downsample_forward.1} parent=35 // pred_check
        %p474 = pneg %p164
      $region38: #{downsample_forward.1} parent=35 // pred_check_branch
        %476 = sbr.rel (%p474) target = $region40
      $region39: #{downsample_forward.1} parent=35 // pred_region
        %s477 = smul.u32 4, %s21
      $region40: #{downsample_forward.1} parent=35 // pred_fallthru
        _
    $region36: #{downsample_forward.1} parent=5 // pred_fallthru
      _
    %p478 = scmp.le.s32.totalorder 2, %s10
    // Predicated region
    $region41: #{downsample_forward.1} parent=5 // pred_check
      %p479 = pneg %p478
    $region42: #{downsample_forward.1} parent=5 // pred_check_branch
      %481 = sbr.rel (%p479) target = $region44
    $region43: #{downsample_forward.1} parent=5 // pred_region
      %s482 = ssub.s32 %s10, 2
      // Predicated region
      $region45: #{downsample_forward.1} parent=43 // pred_check
        %p483 = pneg %p170
      $region46: #{downsample_forward.1} parent=43 // pred_check_branch
        %485 = sbr.rel (%p483) target = $region48
      $region47: #{downsample_forward.1} parent=43 // pred_region
        %s486 = smul.u32 4, %s24
        %p487 = scmp.lt.s32.totalorder %s23, 1
        %s488 = scalar_select %p487, %s23, 1
        %p489 = scmp.lt.s32.totalorder %s486, 3
        %s490 = scalar_select %p489, %s486, 3
        %p491 = scmp.lt.s32.totalorder %s25, 0
        %s492 = scalar_select %p491, %s25, 0
        %s493 = sadd.s32 %s492, %s490
        %s494 = smul.addr %s488, 4
        %s495 = sadd.s32 %s493, %s494
        %s496 = smul.addr %s495, 8
        %s497 = scalar_lea.vmem %s4, %s496
      $region48: #{downsample_forward.1} parent=43 // pred_fallthru
        _
    $region44: #{downsample_forward.1} parent=5 // pred_fallthru
      _
  $region6: #{downsample_forward.1} parent=0 // loop_footer
    %s14 = sadd.s32 1, %s10
  $region7: #{downsample_forward.1} parent=0 // loop_footer_branch
    %9 = sbr.rel target = $region3
  $region8: #{downsample_forward.1} parent=0 // loop_exit
    _

</llo_original>
